<compile_context>
chip_gen: v7x
topology: tpu7x:2x2x1
jax: 0.10.0
libtpu: 0.0.40
codegen_flags: <defaults>
</compile_context>

<pallas_src>
import functools

import jax
import jax.numpy as jnp
from jax.experimental import pallas as pl
from jax.experimental.pallas import tpu as pltpu


# ----------------------------------------------------------------------------
# Fused kernel: both deconv stages + BN(affine) + ReLU for one row-tile.
# ----------------------------------------------------------------------------
def _fused_bimla_kernel(x_ref, w1_ref, b1_ref, w2_ref, b2_ref, o_ref):
    # x_ref : (TM, Cin)          bf16   pixels-as-rows
    # w1_ref: (4, Cin, Cmid)     bf16   BN1 scale folded in; tap k1 = 2*ki1+kj1
    # b1_ref: (1, Cmid)          f32
    # w2_ref: (Cmid, 4*Chead)    bf16   BN2 scale folded in; col = k2*Chead + c
    # b2_ref: (1, 4*Chead)       f32
    # o_ref : (TM, 16*Chead)     f32    col = k1*(4*Chead) + k2*Chead + c
    x = x_ref[...]
    b1 = b1_ref[...]
    w2 = w2_ref[...]
    b2 = b2_ref[...]
    c4h = w2.shape[1]  # 4*Chead (static)

    # Static unroll over the 4 taps of the first deconv.  Each tap's stage-1
    # activation stays resident on-chip and immediately feeds stage 2.
    for k1 in range(4):
        y = jnp.dot(x, w1_ref[k1], preferred_element_type=jnp.float32)
        y = jnp.maximum(y + b1, 0.0).astype(jnp.bfloat16)          # (TM, Cmid)
        z = jnp.dot(y, w2, preferred_element_type=jnp.float32)
        z = jnp.maximum(z + b2, 0.0)                               # (TM, 4*Chead)
        o_ref[:, k1 * c4h:(k1 + 1) * c4h] = z.astype(o_ref.dtype)


# ----------------------------------------------------------------------------
# Parameter preparation (BN fold + tap packing + bf16 cast).
# ----------------------------------------------------------------------------
def _prepare_params(params, eps=1e-5):
    w1, w2 = params["w1"], params["w2"]          # (Cin,Cmid,2,2), (Cmid,Chead,2,2)
    s1 = params["g1"] / jnp.sqrt(params["v1"] + eps)
    b1 = params["b1"] - params["m1"] * s1
    s2 = params["g2"] / jnp.sqrt(params["v2"] + eps)
    b2 = params["b2"] - params["m2"] * s2

    cin, cmid = w1.shape[0], w1.shape[1]
    chead = w2.shape[1]

    # Stage 1: (Cin, Cmid, 2, 2) -> (4, Cin, Cmid), tap k1 = 2*ki1 + kj1,
    # BN1 scale folded into the weight.
    w1p = jnp.transpose(w1, (2, 3, 0, 1)).reshape(4, cin, cmid)
    w1p = (w1p * s1[None, None, :]).astype(jnp.bfloat16)

    # Stage 2: (Cmid, Chead, 2, 2) -> (Cmid, 4*Chead), col = k2*Chead + c,
    # BN2 scale folded in.
    w2p = jnp.transpose(w2, (0, 2, 3, 1)).reshape(cmid, 4 * chead)
    w2p = (w2p * jnp.tile(s2, 4)[None, :]).astype(jnp.bfloat16)

    b1r = b1[None, :].astype(jnp.float32)                # (1, Cmid)
    b2r = jnp.tile(b2, 4)[None, :].astype(jnp.float32)   # (1, 4*Chead)
    return w1p, b1r, w2p, b2r


def _double_pixel_shuffle(y2, n, h, w, chead):
    """(N*H*W, 16*Chead) -> (N, 4H, 4W, Chead).

    Column layout: col = (2*ki1+kj1)*4*Chead + (2*ki2+kj2)*Chead + c,
    output pixel  : (4h + 2*ki1 + ki2, 4w + 2*kj1 + kj2).
    """
    y = y2.reshape(n, h, w, 2, 2, 2, 2, chead)       # n,h,w,ki1,kj1,ki2,kj2,c
    y = jnp.transpose(y, (0, 1, 3, 5, 2, 4, 6, 7))   # n,h,ki1,ki2,w,kj1,kj2,c
    return y.reshape(n, 4 * h, 4 * w, chead)


# ----------------------------------------------------------------------------
# Forward pass wrapper.
# ----------------------------------------------------------------------------
def bimla_head_forward(x_nchw, params, *, tm=256, eps=1e-5):
    """Forward pass. x_nchw: (N, Cin, H, W) float32. Returns NCHW float32."""
    n, cin, h, w = x_nchw.shape
    cmid = params["w1"].shape[1]
    chead = params["w2"].shape[1]
    kout = 16 * chead

    w1p, b1r, w2p, b2r = _prepare_params(params, eps)

    m = n * h * w
    # NCHW -> NHWC -> (M, Cin) pixel matrix, bf16 for the MXU.
    x2d = jnp.transpose(x_nchw, (0, 2, 3, 1)).reshape(m, cin).astype(jnp.bfloat16)

    # Row-tile size: whole problem if small, else a multiple of 8.  Ragged last
    # tile is handled by pl.cdiv (row-independent math, masked writeback).
    tm_eff = m if m <= tm else tm
    grid = (pl.cdiv(m, tm_eff),)

    y2 = pl.pallas_call(
        _fused_bimla_kernel,
        out_shape=jax.ShapeDtypeStruct((m, kout), jnp.float32),
        grid_spec=pltpu.PrefetchScalarGridSpec(
            num_scalar_prefetch=0,
            grid=grid,
            in_specs=[
                pl.BlockSpec((tm_eff, cin), lambda i: (i, 0)),        # x
                pl.BlockSpec((4, cin, cmid), lambda i: (0, 0, 0)),    # W1 packed
                pl.BlockSpec((1, cmid), lambda i: (0, 0)),            # b1
                pl.BlockSpec((cmid, 4 * chead), lambda i: (0, 0)),    # W2 packed
                pl.BlockSpec((1, 4 * chead), lambda i: (0, 0)),       # b2
            ],
            out_specs=pl.BlockSpec((tm_eff, kout), lambda i: (i, 0)),
        ),
        compiler_params=pltpu.CompilerParams(
            dimension_semantics=("parallel",),   # row tiles are independent
        ),
    )(x2d, w1p, b1r, w2p, b2r)

    out_nhwc = _double_pixel_shuffle(y2, n, h, w, chead)
    return jnp.transpose(out_nhwc, (0, 3, 1, 2))     # back to NCHW


# ----------------------------------------------------------------------------
# References for correctness checks.
# ----------------------------------------------------------------------------
def _reference_bf16(x_nchw, params, eps=1e-5):
    """Plain-jnp mirror of the exact kernel math path (same bf16 casts)."""
    n, cin, h, w = x_nchw.shape
    chead = params["w2"].shape[1]
    w1p, b1r, w2p, b2r = _prepare_params(params, eps)
    x = jnp.transpose(x_nchw, (0, 2, 3, 1)).reshape(n * h * w, cin)
    x = x.astype(jnp.bfloat16)
    cols = []
    for k1 in range(4):
        y = jnp.dot(x, w1p[k1], preferred_element_type=jnp.float32)
        y = jnp.maximum(y + b1r, 0.0).astype(jnp.bfloat16)
        z = jnp.dot(y, w2p, preferred_element_type=jnp.float32)
        cols.append(jnp.maximum(z + b2r, 0.0))
    y2 = jnp.concatenate(cols, axis=-1)
    out = _double_pixel_shuffle(y2, n, h, w, chead)
    return jnp.transpose(out, (0, 3, 1, 2))


def _reference_f32(x_nchw, params, eps=1e-5):
    """Independent full-f32 reference (per-stage deconv + BN + ReLU)."""
    def deconv2x2(x_nhwc, wgt):            # wgt: (Cin, Cout, 2, 2)
        n, h, wd, _ = x_nhwc.shape
        cout = wgt.shape[1]
        y = jnp.einsum("nhwc,cokl->nhwklo", x_nhwc, wgt)  # (n,h,w,ki,kj,cout)
        y = jnp.transpose(y, (0, 1, 3, 2, 4, 5)).reshape(n, 2 * h, 2 * wd, cout)
        return y

    def bn_relu(y, g, b, m, v):
        s = g / jnp.sqrt(v + eps)
        return jnp.maximum(y * s + (b - m * s), 0.0)

    x = jnp.transpose(x_nchw, (0, 2, 3, 1)).astype(jnp.float32)
    y = bn_relu(deconv2x2(x, params["w1"]),
                params["g1"], params["b1"], params["m1"], params["v1"])
    y = bn_relu(deconv2x2(y, params["w2"]),
                params["g2"], params["b2"], params["m2"], params["v2"])
    return jnp.transpose(y, (0, 3, 1, 2))


def make_params(key, in_channel=32, middle_channels=32, head_channels=64):
    ks = jax.random.split(key, 4)
    # ConvTranspose2d weight shape in PyTorch: (in_ch, out_ch, kH, kW)
    w1 = 0.1 * jax.random.normal(ks[0], (in_channel, middle_channels, 2, 2),
                                 dtype=jnp.float32)
    w2 = 0.1 * jax.random.normal(ks[1], (middle_channels, head_channels, 2, 2),
                                 dtype=jnp.float32)
    # Deterministic, non-trivial BN params (eval-mode running stats).
    g1 = 1.0 + 0.01 * jnp.arange(middle_channels, dtype=jnp.float32)
    b1 = 0.05 * jnp.arange(middle_channels, dtype=jnp.float32)
    m1 = 0.02 * jnp.arange(middle_channels, dtype=jnp.float32)
    v1 = 1.0 + 0.03 * jnp.arange(middle_channels, dtype=jnp.float32)
    g2 = 1.0 + 0.01 * jnp.arange(head_channels, dtype=jnp.float32)
    b2 = -0.02 * jnp.arange(head_channels, dtype=jnp.float32)
    m2 = 0.01 * jnp.arange(head_channels, dtype=jnp.float32)
    v2 = 1.0 + 0.02 * jnp.arange(head_channels, dtype=jnp.float32)
    return dict(w1=w1, g1=g1, b1=b1, m1=m1, v1=v1,
                w2=w2, g2=b2 * 0 + g2, b2=b2, m2=m2, v2=v2)


if __name__ == "__main__":
    key = jax.random.PRNGKey(0)
    k_x, k_p = jax.random.split(key)

    N, CIN, H, W = 2, 32, 8, 8          # consistent with in_channel=32
    x = jax.random.normal(k_x, (N, CIN, H, W), dtype=jnp.float32)
    params = make_params(k_p, in_channel=32, middle_channels=32, head_channels=64)

    # tm=64 gives a 2-step parallel grid at this toy size (exercises tiling and
    # lets v7x shard across both TensorCores); for real image sizes leave the
    # default tm=256 (~1 MiB output tile, >85% of HBM roofline territory).
    fwd = jax.jit(functools.partial(bimla_head_forward, tm=64))
    out = jax.block_until_ready(fwd(x, params))
    assert out.shape == (N, 64, 4 * H, 4 * W), out.shape

    # Check 1: exact same math path (bf16 casts, packing, fused shuffle) in jnp.
    ref_bf16 = jax.block_until_ready(_reference_bf16(x, params))
    err1 = float(jnp.max(jnp.abs(out - ref_bf16)))
    assert jnp.allclose(out, ref_bf16, atol=2e-3, rtol=2e-3), err1

    # Check 2: independent full-f32 reference (loose tol covers bf16 rounding).
    ref_f32 = jax.block_until_ready(_reference_f32(x, params))
    err2 = float(jnp.max(jnp.abs(out - ref_f32)))
    assert jnp.allclose(out, ref_f32, atol=1e-1, rtol=1e-1), err2

    print("KERNEL_OK")
</pallas_src>

<mosaic_0001>
module attributes {stable_mosaic.version = 11 : i64} {
  func.func @_fused_bimla_kernel(%arg0: i32, %arg1: memref<64x32xbf16, #tpu.memory_space<vmem>>, %arg2: memref<4x32x32xbf16, #tpu.memory_space<vmem>>, %arg3: memref<1x32xf32, #tpu.memory_space<vmem>>, %arg4: memref<32x256xbf16, #tpu.memory_space<vmem>>, %arg5: memref<1x256xf32, #tpu.memory_space<vmem>>, %arg6: memref<64x1024xf32, #tpu.memory_space<vmem>>) attributes {dimension_semantics = [#tpu.dimension_semantics<parallel>], iteration_bounds = array<i64: 2>, scalar_prefetch = 0 : i64, scratch_operands = 0 : i64, tpu.core_type = #tpu.core_type<tc>, window_params = [{transform_indices = @transform_0, window_bounds = array<i64: 64, 32>}, {pipeline_mode = #tpu.pipeline_mode<synchronous>, transform_indices = @transform_1, window_bounds = array<i64: 4, 32, 32>}, {pipeline_mode = #tpu.pipeline_mode<synchronous>, transform_indices = @transform_2, window_bounds = array<i64: 1, 32>}, {pipeline_mode = #tpu.pipeline_mode<synchronous>, transform_indices = @transform_3, window_bounds = array<i64: 32, 256>}, {pipeline_mode = #tpu.pipeline_mode<synchronous>, transform_indices = @transform_4, window_bounds = array<i64: 1, 256>}, {transform_indices = @transform_5, window_bounds = array<i64: 64, 1024>}]} {
    %c0 = arith.constant 0 : index
    %c0_0 = arith.constant 0 : index
    %0 = vector.load %arg1[%c0, %c0_0] : memref<64x32xbf16, #tpu.memory_space<vmem>>, vector<64x32xbf16>
    %c0_1 = arith.constant 0 : index
    %c0_2 = arith.constant 0 : index
    %1 = vector.load %arg3[%c0_1, %c0_2] : memref<1x32xf32, #tpu.memory_space<vmem>>, vector<1x32xf32>
    %c0_3 = arith.constant 0 : index
    %c0_4 = arith.constant 0 : index
    %2 = vector.load %arg4[%c0_3, %c0_4] : memref<32x256xbf16, #tpu.memory_space<vmem>>, vector<32x256xbf16>
    %c0_5 = arith.constant 0 : index
    %c0_6 = arith.constant 0 : index
    %3 = vector.load %arg5[%c0_5, %c0_6] : memref<1x256xf32, #tpu.memory_space<vmem>>, vector<1x256xf32>
    %c0_7 = arith.constant 0 : index
    %c0_8 = arith.constant 0 : index
    %c0_9 = arith.constant 0 : index
    %4 = vector.load %arg2[%c0_7, %c0_8, %c0_9] : memref<4x32x32xbf16, #tpu.memory_space<vmem>>, vector<1x32x32xbf16>
    %5 = vector.shape_cast %4 : vector<1x32x32xbf16> to vector<32x32xbf16>
    %cst = arith.constant dense<0.000000e+00> : vector<64x32xf32>
    %6 = tpu.matmul %0, %5, %cst {dimension_numbers = #tpu.dot_dimension_numbers<[1], [0], [0], [1], [0, 0, 1, 1], [], []>} : vector<64x32xbf16>, vector<32x32xbf16>, vector<64x32xf32> -> vector<64x32xf32>
    %7 = vector.broadcast %1 : vector<1x32xf32> to vector<64x32xf32>
    %8 = arith.addf %6, %7 : vector<64x32xf32>
    %cst_10 = arith.constant 0.000000e+00 : f32
    %9 = vector.broadcast %cst_10 : f32 to vector<64x32xf32>
    %10 = arith.maximumf %8, %9 : vector<64x32xf32>
    %11 = arith.truncf %10 : vector<64x32xf32> to vector<64x32xbf16>
    %cst_11 = arith.constant dense<0.000000e+00> : vector<64x256xf32>
    %12 = tpu.matmul %11, %2, %cst_11 {dimension_numbers = #tpu.dot_dimension_numbers<[1], [0], [0], [1], [0, 0, 1, 1], [], []>} : vector<64x32xbf16>, vector<32x256xbf16>, vector<64x256xf32> -> vector<64x256xf32>
    %13 = vector.broadcast %3 : vector<1x256xf32> to vector<64x256xf32>
    %14 = arith.addf %12, %13 : vector<64x256xf32>
    %cst_12 = arith.constant 0.000000e+00 : f32
    %15 = vector.broadcast %cst_12 : f32 to vector<64x256xf32>
    %16 = arith.maximumf %14, %15 : vector<64x256xf32>
    %c0_13 = arith.constant 0 : index
    %c0_14 = arith.constant 0 : index
    %17 = vector.load %arg6[%c0_13, %c0_14] : memref<64x1024xf32, #tpu.memory_space<vmem>>, vector<64x256xf32>
    tpu.vector_store %arg6[%c0_13, %c0_14], %16 {strides = array<i32>} : memref<64x1024xf32, #tpu.memory_space<vmem>>, vector<64x256xf32>,
    %c1 = arith.constant 1 : index
    %c0_15 = arith.constant 0 : index
    %c0_16 = arith.constant 0 : index
    %18 = vector.load %arg2[%c1, %c0_15, %c0_16] : memref<4x32x32xbf16, #tpu.memory_space<vmem>>, vector<1x32x32xbf16>
    %19 = vector.shape_cast %18 : vector<1x32x32xbf16> to vector<32x32xbf16>
    %cst_17 = arith.constant dense<0.000000e+00> : vector<64x32xf32>
    %20 = tpu.matmul %0, %19, %cst_17 {dimension_numbers = #tpu.dot_dimension_numbers<[1], [0], [0], [1], [0, 0, 1, 1], [], []>} : vector<64x32xbf16>, vector<32x32xbf16>, vector<64x32xf32> -> vector<64x32xf32>
    %21 = vector.broadcast %1 : vector<1x32xf32> to vector<64x32xf32>
    %22 = arith.addf %20, %21 : vector<64x32xf32>
    %cst_18 = arith.constant 0.000000e+00 : f32
    %23 = vector.broadcast %cst_18 : f32 to vector<64x32xf32>
    %24 = arith.maximumf %22, %23 : vector<64x32xf32>
    %25 = arith.truncf %24 : vector<64x32xf32> to vector<64x32xbf16>
    %cst_19 = arith.constant dense<0.000000e+00> : vector<64x256xf32>
    %26 = tpu.matmul %25, %2, %cst_19 {dimension_numbers = #tpu.dot_dimension_numbers<[1], [0], [0], [1], [0, 0, 1, 1], [], []>} : vector<64x32xbf16>, vector<32x256xbf16>, vector<64x256xf32> -> vector<64x256xf32>
    %27 = vector.broadcast %3 : vector<1x256xf32> to vector<64x256xf32>
    %28 = arith.addf %26, %27 : vector<64x256xf32>
    %cst_20 = arith.constant 0.000000e+00 : f32
    %29 = vector.broadcast %cst_20 : f32 to vector<64x256xf32>
    %30 = arith.maximumf %28, %29 : vector<64x256xf32>
    %c0_21 = arith.constant 0 : index
    %c256 = arith.constant 256 : index
    %31 = vector.load %arg6[%c0_21, %c256] : memref<64x1024xf32, #tpu.memory_space<vmem>>, vector<64x256xf32>
    tpu.vector_store %arg6[%c0_21, %c256], %30 {strides = array<i32>} : memref<64x1024xf32, #tpu.memory_space<vmem>>, vector<64x256xf32>,
    %c2 = arith.constant 2 : index
    %c0_22 = arith.constant 0 : index
    %c0_23 = arith.constant 0 : index
    %32 = vector.load %arg2[%c2, %c0_22, %c0_23] : memref<4x32x32xbf16, #tpu.memory_space<vmem>>, vector<1x32x32xbf16>
    %33 = vector.shape_cast %32 : vector<1x32x32xbf16> to vector<32x32xbf16>
    %cst_24 = arith.constant dense<0.000000e+00> : vector<64x32xf32>
    %34 = tpu.matmul %0, %33, %cst_24 {dimension_numbers = #tpu.dot_dimension_numbers<[1], [0], [0], [1], [0, 0, 1, 1], [], []>} : vector<64x32xbf16>, vector<32x32xbf16>, vector<64x32xf32> -> vector<64x32xf32>
    %35 = vector.broadcast %1 : vector<1x32xf32> to vector<64x32xf32>
    %36 = arith.addf %34, %35 : vector<64x32xf32>
    %cst_25 = arith.constant 0.000000e+00 : f32
    %37 = vector.broadcast %cst_25 : f32 to vector<64x32xf32>
    %38 = arith.maximumf %36, %37 : vector<64x32xf32>
    %39 = arith.truncf %38 : vector<64x32xf32> to vector<64x32xbf16>
    %cst_26 = arith.constant dense<0.000000e+00> : vector<64x256xf32>
    %40 = tpu.matmul %39, %2, %cst_26 {dimension_numbers = #tpu.dot_dimension_numbers<[1], [0], [0], [1], [0, 0, 1, 1], [], []>} : vector<64x32xbf16>, vector<32x256xbf16>, vector<64x256xf32> -> vector<64x256xf32>
    %41 = vector.broadcast %3 : vector<1x256xf32> to vector<64x256xf32>
    %42 = arith.addf %40, %41 : vector<64x256xf32>
    %cst_27 = arith.constant 0.000000e+00 : f32
    %43 = vector.broadcast %cst_27 : f32 to vector<64x256xf32>
    %44 = arith.maximumf %42, %43 : vector<64x256xf32>
    %c0_28 = arith.constant 0 : index
    %c512 = arith.constant 512 : index
    %45 = vector.load %arg6[%c0_28, %c512] : memref<64x1024xf32, #tpu.memory_space<vmem>>, vector<64x256xf32>
    tpu.vector_store %arg6[%c0_28, %c512], %44 {strides = array<i32>} : memref<64x1024xf32, #tpu.memory_space<vmem>>, vector<64x256xf32>,
    %c3 = arith.constant 3 : index
    %c0_29 = arith.constant 0 : index
    %c0_30 = arith.constant 0 : index
    %46 = vector.load %arg2[%c3, %c0_29, %c0_30] : memref<4x32x32xbf16, #tpu.memory_space<vmem>>, vector<1x32x32xbf16>
    %47 = vector.shape_cast %46 : vector<1x32x32xbf16> to vector<32x32xbf16>
    %cst_31 = arith.constant dense<0.000000e+00> : vector<64x32xf32>
    %48 = tpu.matmul %0, %47, %cst_31 {dimension_numbers = #tpu.dot_dimension_numbers<[1], [0], [0], [1], [0, 0, 1, 1], [], []>} : vector<64x32xbf16>, vector<32x32xbf16>, vector<64x32xf32> -> vector<64x32xf32>
    %49 = vector.broadcast %1 : vector<1x32xf32> to vector<64x32xf32>
    %50 = arith.addf %48, %49 : vector<64x32xf32>
    %cst_32 = arith.constant 0.000000e+00 : f32
    %51 = vector.broadcast %cst_32 : f32 to vector<64x32xf32>
    %52 = arith.maximumf %50, %51 : vector<64x32xf32>
    %53 = arith.truncf %52 : vector<64x32xf32> to vector<64x32xbf16>
    %cst_33 = arith.constant dense<0.000000e+00> : vector<64x256xf32>
    %54 = tpu.matmul %53, %2, %cst_33 {dimension_numbers = #tpu.dot_dimension_numbers<[1], [0], [0], [1], [0, 0, 1, 1], [], []>} : vector<64x32xbf16>, vector<32x256xbf16>, vector<64x256xf32> -> vector<64x256xf32>
    %55 = vector.broadcast %3 : vector<1x256xf32> to vector<64x256xf32>
    %56 = arith.addf %54, %55 : vector<64x256xf32>
    %cst_34 = arith.constant 0.000000e+00 : f32
    %57 = vector.broadcast %cst_34 : f32 to vector<64x256xf32>
    %58 = arith.maximumf %56, %57 : vector<64x256xf32>
    %c0_35 = arith.constant 0 : index
    %c768 = arith.constant 768 : index
    %59 = vector.load %arg6[%c0_35, %c768] : memref<64x1024xf32, #tpu.memory_space<vmem>>, vector<64x256xf32>
    tpu.vector_store %arg6[%c0_35, %c768], %58 {strides = array<i32>} : memref<64x1024xf32, #tpu.memory_space<vmem>>, vector<64x256xf32>,
    return
  }
  func.func @transform_0(%arg0: i32) -> (i32, i32) {
    %c0_i32 = arith.constant 0 : i32
    %c0_i32_0 = arith.constant 0 : i32
    return %arg0, %c0_i32 : i32, i32
  }
  func.func @transform_1(%arg0: i32) -> (i32, i32, i32) {
    %c0_i32 = arith.constant 0 : i32
    %c0_i32_0 = arith.constant 0 : i32
    %c0_i32_1 = arith.constant 0 : i32
    %c0_i32_2 = arith.constant 0 : i32
    return %c0_i32, %c0_i32_0, %c0_i32_1 : i32, i32, i32
  }
  func.func @transform_2(%arg0: i32) -> (i32, i32) {
    %c0_i32 = arith.constant 0 : i32
    %c0_i32_0 = arith.constant 0 : i32
    %c0_i32_1 = arith.constant 0 : i32
    return %c0_i32, %c0_i32_0 : i32, i32
  }
  func.func @transform_3(%arg0: i32) -> (i32, i32) {
    %c0_i32 = arith.constant 0 : i32
    %c0_i32_0 = arith.constant 0 : i32
    %c0_i32_1 = arith.constant 0 : i32
    return %c0_i32, %c0_i32_0 : i32, i32
  }
  func.func @transform_4(%arg0: i32) -> (i32, i32) {
    %c0_i32 = arith.constant 0 : i32
    %c0_i32_0 = arith.constant 0 : i32
    %c0_i32_1 = arith.constant 0 : i32
    return %c0_i32, %c0_i32_0 : i32, i32
  }
  func.func @transform_5(%arg0: i32) -> (i32, i32) {
    %c0_i32 = arith.constant 0 : i32
    %c0_i32_0 = arith.constant 0 : i32
    return %arg0, %c0_i32 : i32, i32
  }
}

</mosaic_0001>

<llo_original>
// kernel: tile.18
$region0: #{tile.18}
  #allocation0 [shape = 's32[1]{0}', space=sflag, size = 0x4, scoped, tag = 'scoped memory for tile.18']
  %s0 = inlined_call_operand.vmem [shape: f32[64], index: 0, kind: input, shape index: {}]
  %s1 = inlined_call_operand.vmem [shape: f32[4,64], index: 1, kind: output, shape index: {}]
  // Predicated region
  $region2: #{tile.18} parent=0 // pred_check
    _
  $region3: #{tile.18} parent=0 // pred_check_branch
    %3 = sbr.rel (0) target = $region5
  $region4: #{tile.18} parent=0 // pred_region
    _
  $region5: #{tile.18} parent=0 // pred_fallthru
    _
  %v4 = vld [vmem:[%s0] ss:$0 sm:$0xff]
  %5 = vst [vmem:[%s1] sm:$0xf] %v4

// kernel: tile.19
$region0: #{tile.19}
  %s0 = inlined_call_operand.vmem [shape: f32[4,64], index: 0, kind: input, shape index: {}]
  %s1 = inlined_call_operand.vmem [shape: f32[1,256], index: 1, kind: output, shape index: {}]
  $region1: #{tile.19} parent=0
    #allocation0 [shape = 'u8[8192]{0}', space=vmem, size = 0x2000, scoped, tag = 'scoped mem for output reshape']
    #allocation1 [shape = 'u8[4096]{0}', space=vmem, size = 0x1000, scoped, tag = 'scoped mem for input reshape']
    %s3 = sshllo.u32 0, 4
    %v4 = vld [vmem:[%s0] sm:%s3]
    %5 = vst [vmem:[#allocation1] sm:%s3] %v4
    %s6 = smov 3
    %v7 = vld [vmem:[#allocation1] ss:$2 sm:%s6]
    %vm8 = vcmask 523264
    %9 = vst.msk [vmem:[#allocation0] ss:$8 sm:$0x3] %vm8, %v7
    %s10 = scalar_lea.vmem [#allocation1], 1
    %s11 = smov 3
    %v12 = vld [vmem:[%s10] ss:$2 sm:%s11]
    %13 = vrot.lane.b32.xlu0 %v12, 64
    %v14 = vpop.permute.xlu0 %13
    %vm15 = vcmask 1048064
    %16 = vst.msk [vmem:[#allocation0] ss:$8 sm:$0x3] %vm15, %v14
    %s18 = sshllo.u32 0, 1
    %v20 = vld [vmem:[#allocation0] sm:%s18]
    %s21 = sshllo.u32 0, 1
    %22 = vst [vmem:[%s1] sm:%s21] %v20
    %s23 = scalar_lea.vmem [#allocation0], 8
    %v24 = vld [vmem:[%s23] sm:%s18]
    %s25 = sshllo.u32 0, 1
    %s26 = scalar_lea.vmem %s1, 1
    %27 = vst [vmem:[%s26] sm:%s25] %v24

// kernel: mul.17
$region0: #{mul.17}
  %s0 = inlined_call_operand.vmem [shape: f32[4,64], index: 0, kind: input, shape index: {}]
  %s1 = inlined_call_operand.vmem [shape: f32[256], index: 1, kind: output, shape index: {}]
  $region1: #{mul.17} parent=0
    #allocation0 [shape = 'u8[4096]{0}', space=vmem, size = 0x1000, scoped, tag = 'scoped mem for output reshape']
    #allocation1 [shape = 'u8[4096]{0}', space=vmem, size = 0x1000, scoped, tag = 'scoped mem for input reshape']
    %s3 = sshllo.u32 0, 4
    %v4 = vld [vmem:[%s0] sm:%s3]
    %5 = vst [vmem:[#allocation1] sm:%s3] %v4
    %s6 = smov 3
    %v7 = vld [vmem:[#allocation1] ss:$2 sm:%s6]
    %vm8 = vcmask 523264
    %9 = vst.msk [vmem:[#allocation0] sm:$0x3] %vm8, %v7
    %s10 = scalar_lea.vmem [#allocation1], 1
    %s11 = smov 3
    %v12 = vld [vmem:[%s10] ss:$2 sm:%s11]
    %13 = vrot.lane.b32.xlu0 %v12, 64
    %v14 = vpop.permute.xlu0 %13
    %vm15 = vcmask 1048064
    %16 = vst.msk [vmem:[#allocation0] sm:$0x3] %vm15, %v14
    %s18 = sshllo.u32 0, 2
    %v20 = vld [vmem:[#allocation0] sm:%s18]
    %s21 = sshllo.u32 0, 2
    %22 = vst [vmem:[%s1] sm:%s21] %v20

// kernel: bimla_head_forward.1
$region0: #{bimla_head_forward.1}
  #allocation0 [shape = 'u32[]', space=smem, size = 0x4, offset = 0x4, fixed_abs, tag = 'smem constant byte address 0x4 - core index']
  #allocation1 [shape = 'u32[144,128]{1,0:T(1,128)}', space=vmem, size = 0x12000, scoped, tag = 'internal scratch']
  %s0 = inlined_call_operand.vmem [shape: bf16[128,32], index: 0, kind: input, shape index: {}]
  %s1 = inlined_call_operand.vmem [shape: bf16[4,32,32], index: 1, kind: input, shape index: {}]
  %s2 = inlined_call_operand.vmem [shape: f32[1,32], index: 2, kind: input, shape index: {}]
  %s3 = inlined_call_operand.vmem [shape: bf16[32,256], index: 3, kind: input, shape index: {}]
  %s4 = inlined_call_operand.vmem [shape: f32[1,256], index: 4, kind: input, shape index: {}]
  %s5 = inlined_call_operand.vmem [shape: f32[128,1024], index: 5, kind: output, shape index: {}]
  %s6 = sld [smem:[#allocation0]]
  $region53: #{bimla_head_forward.1} parent=0
    _
  %s8 = ssub.s32 1, %s6
  %s9 = scalar_select 0, %s8, %s6
  loop: start=0, step=1, limit=4
  $region2: #{bimla_head_forward.1} parent=0 // loop_pre_header
    _
  $region3: #{bimla_head_forward.1} parent=0 // loop_header
    %s11 = sphi 0, %s15
    %p12 = scmp.ge.s32.totalorder %s11, 4
    %s21 = sphi 0, %s23
    %s24 = sphi 0, %s21
    %s25 = sphi 0, %s24
    %s41 = sphi 0, %s25
    %s45 = sphi 0, %s45
    %s47 = sphi 0, %s45
    %s48 = sphi 0, %s47
    %s62 = sphi 0, %s48
    %s66 = sphi 0, %s66
    %s68 = sphi 0, %s66
    %s69 = sphi 0, %s68
    %s83 = sphi 0, %s69
    %s87 = sphi 0, %s87
    %s89 = sphi 0, %s87
    %s90 = sphi 0, %s89
    %s104 = sphi 0, %s90
    %s108 = sphi 0, %s108
    %s110 = sphi 0, %s108
    %s111 = sphi 0, %s110
    %s125 = sphi 0, %s111
    %s131 = sphi 0, %s133
    %s134 = sphi 0, %s131
    %s135 = sphi 0, %s134
    %s151 = sphi 0, %s135
  $region4: #{bimla_head_forward.1} parent=0 // loop_header_branch
    %14 = sbr.rel (%p12) target = $region8
  $region5: #{bimla_head_forward.1} parent=0 // loop_body
    %s16 = ssub.s32 %s11, 1
    %s17 = ssub.s32 %s11, 2
    %s18 = sadd.s32 %s11, 1
    %s19 = ssub.s32 %s11, %s18
    %p20 = scmp.eq.s32.totalorder %s19, 0
    %s22 = sadd.s32 %s21, 1
    %s23 = scalar_select %p20, %s21, %s22
    %p26 = pneg %p20
    %p27 = scmp.eq.s32.totalorder %s11, 1
    %p28 = por %p26, %p27
    %p29 = scmp.ne.s32.totalorder %s21, %s24
    %p30 = scmp.eq.s32.totalorder %s11, 0
    %p31 = por %p29, %p30
    %p32 = scmp.ne.s32.totalorder %s21, %s24
    %p33 = scmp.eq.s32.totalorder %s16, 1
    %p34 = por %p32, %p33
    %p35 = scmp.ne.s32.totalorder %s24, %s25
    %p36 = scmp.eq.s32.totalorder %s16, 0
    %p37 = por %p35, %p36
    %p38 = scmp.ne.s32.totalorder %s24, %s25
    %p39 = scmp.eq.s32.totalorder %s17, 1
    %p40 = por %p38, %p39
    %p42 = scmp.ne.s32.totalorder %s25, %s41
    %p43 = scmp.eq.s32.totalorder %s17, 0
    %p44 = por %p42, %p43
    %s46 = sadd.s32 %s45, 1
    %p49 = scmp.eq.s32.totalorder %s11, 1
    %p50 = scmp.ne.s32.totalorder %s45, %s47
    %p51 = scmp.eq.s32.totalorder %s11, 0
    %p52 = por %p50, %p51
    %p53 = scmp.ne.s32.totalorder %s45, %s47
    %p54 = scmp.eq.s32.totalorder %s16, 1
    %p55 = por %p53, %p54
    %p56 = scmp.ne.s32.totalorder %s47, %s48
    %p57 = scmp.eq.s32.totalorder %s16, 0
    %p58 = por %p56, %p57
    %p59 = scmp.ne.s32.totalorder %s47, %s48
    %p60 = scmp.eq.s32.totalorder %s17, 1
    %p61 = por %p59, %p60
    %p63 = scmp.ne.s32.totalorder %s48, %s62
    %p64 = scmp.eq.s32.totalorder %s17, 0
    %p65 = por %p63, %p64
    %s67 = sadd.s32 %s66, 1
    %p70 = scmp.eq.s32.totalorder %s11, 1
    %p71 = scmp.ne.s32.totalorder %s66, %s68
    %p72 = scmp.eq.s32.totalorder %s11, 0
    %p73 = por %p71, %p72
    %p74 = scmp.ne.s32.totalorder %s66, %s68
    %p75 = scmp.eq.s32.totalorder %s16, 1
    %p76 = por %p74, %p75
    %p77 = scmp.ne.s32.totalorder %s68, %s69
    %p78 = scmp.eq.s32.totalorder %s16, 0
    %p79 = por %p77, %p78
    %p80 = scmp.ne.s32.totalorder %s68, %s69
    %p81 = scmp.eq.s32.totalorder %s17, 1
    %p82 = por %p80, %p81
    %p84 = scmp.ne.s32.totalorder %s69, %s83
    %p85 = scmp.eq.s32.totalorder %s17, 0
    %p86 = por %p84, %p85
    %s88 = sadd.s32 %s87, 1
    %p91 = scmp.eq.s32.totalorder %s11, 1
    %p92 = scmp.ne.s32.totalorder %s87, %s89
    %p93 = scmp.eq.s32.totalorder %s11, 0
    %p94 = por %p92, %p93
    %p95 = scmp.ne.s32.totalorder %s87, %s89
    %p96 = scmp.eq.s32.totalorder %s16, 1
    %p97 = por %p95, %p96
    %p98 = scmp.ne.s32.totalorder %s89, %s90
    %p99 = scmp.eq.s32.totalorder %s16, 0
    %p100 = por %p98, %p99
    %p101 = scmp.ne.s32.totalorder %s89, %s90
    %p102 = scmp.eq.s32.totalorder %s17, 1
    %p103 = por %p101, %p102
    %p105 = scmp.ne.s32.totalorder %s90, %s104
    %p106 = scmp.eq.s32.totalorder %s17, 0
    %p107 = por %p105, %p106
    %s109 = sadd.s32 %s108, 1
    %p112 = scmp.eq.s32.totalorder %s11, 1
    %p113 = scmp.ne.s32.totalorder %s108, %s110
    %p114 = scmp.eq.s32.totalorder %s11, 0
    %p115 = por %p113, %p114
    %p116 = scmp.ne.s32.totalorder %s108, %s110
    %p117 = scmp.eq.s32.totalorder %s16, 1
    %p118 = por %p116, %p117
    %p119 = scmp.ne.s32.totalorder %s110, %s111
    %p120 = scmp.eq.s32.totalorder %s16, 0
    %p121 = por %p119, %p120
    %p122 = scmp.ne.s32.totalorder %s110, %s111
    %p123 = scmp.eq.s32.totalorder %s17, 1
    %p124 = por %p122, %p123
    %p126 = scmp.ne.s32.totalorder %s111, %s125
    %p127 = scmp.eq.s32.totalorder %s17, 0
    %p128 = por %p126, %p127
    %s129 = ssub.s32 %s11, %s18
    %p130 = scmp.eq.s32.totalorder %s129, 0
    %s132 = sadd.s32 %s131, 1
    %s133 = scalar_select %p130, %s131, %s132
    %p136 = pneg %p130
    %p137 = scmp.eq.s32.totalorder %s11, 1
    %p138 = por %p136, %p137
    %p139 = scmp.ne.s32.totalorder %s131, %s134
    %p140 = scmp.eq.s32.totalorder %s11, 0
    %p141 = por %p139, %p140
    %p142 = scmp.ne.s32.totalorder %s131, %s134
    %p143 = scmp.eq.s32.totalorder %s16, 1
    %p144 = por %p142, %p143
    %p145 = scmp.ne.s32.totalorder %s134, %s135
    %p146 = scmp.eq.s32.totalorder %s16, 0
    %p147 = por %p145, %p146
    %p148 = scmp.ne.s32.totalorder %s134, %s135
    %p149 = scmp.eq.s32.totalorder %s17, 1
    %p150 = por %p148, %p149
    %p152 = scmp.ne.s32.totalorder %s135, %s151
    %p153 = scmp.eq.s32.totalorder %s17, 0
    %p154 = por %p152, %p153
    %p155 = scmp.le.s32.totalorder 1, %s11
    %p156 = scmp.lt.s32.totalorder %s11, 3
    %p157 = pnand %p155, %p156
    %p158 = pneg %p157
    // Predicated region
    $region9: #{bimla_head_forward.1} parent=5 // pred_check
      _
    $region10: #{bimla_head_forward.1} parent=5 // pred_check_branch
      %160 = sbr.rel (%p157) target = $region12
    $region11: #{bimla_head_forward.1} parent=5 // pred_region
      %s161 = ssub.s32 %s11, 1
      // Predicated region
      $region13: #{bimla_head_forward.1} parent=11 // pred_check
        %p162 = pneg %p58
      $region14: #{bimla_head_forward.1} parent=11 // pred_check_branch
        %164 = sbr.rel (%p162) target = $region16
      $region15: #{bimla_head_forward.1} parent=11 // pred_region
        _
      $region16: #{bimla_head_forward.1} parent=11 // pred_fallthru
        _
      // Predicated region
      $region17: #{bimla_head_forward.1} parent=11 // pred_check
        %p165 = pneg %p79
      $region18: #{bimla_head_forward.1} parent=11 // pred_check_branch
        %167 = sbr.rel (%p165) target = $region20
      $region19: #{bimla_head_forward.1} parent=11 // pred_region
        _
      $region20: #{bimla_head_forward.1} parent=11 // pred_fallthru
        _
      // Predicated region
      $region21: #{bimla_head_forward.1} parent=11 // pred_check
        %p168 = pneg %p100
      $region22: #{bimla_head_forward.1} parent=11 // pred_check_branch
        %170 = sbr.rel (%p168) target = $region24
      $region23: #{bimla_head_forward.1} parent=11 // pred_region
        _
      $region24: #{bimla_head_forward.1} parent=11 // pred_fallthru
        _
      // Predicated region
      $region25: #{bimla_head_forward.1} parent=11 // pred_check
        %p171 = pneg %p121
      $region26: #{bimla_head_forward.1} parent=11 // pred_check_branch
        %173 = sbr.rel (%p171) target = $region28
      $region27: #{bimla_head_forward.1} parent=11 // pred_region
        _
      $region28: #{bimla_head_forward.1} parent=11 // pred_fallthru
        _
    $region12: #{bimla_head_forward.1} parent=5 // pred_fallthru
      _
    %p174 = scmp.lt.s32.totalorder %s11, 2
    // Predicated region
    $region29: #{bimla_head_forward.1} parent=5 // pred_check
      %p175 = pneg %p174
    $region30: #{bimla_head_forward.1} parent=5 // pred_check_branch
      %177 = sbr.rel (%p175) target = $region32
    $region31: #{bimla_head_forward.1} parent=5 // pred_region
      // Predicated region
      $region33: #{bimla_head_forward.1} parent=31 // pred_check
        %p178 = pneg %p31
      $region34: #{bimla_head_forward.1} parent=31 // pred_check_branch
        %180 = sbr.rel (%p178) target = $region36
      $region35: #{bimla_head_forward.1} parent=31 // pred_region
        %s181 = smul.u32 8, %s11
        %p182 = scmp.lt.s32.totalorder %s181, 15
        %s183 = scalar_select %p182, %s181, 15
        %s184 = smul.addr %s183, 4
        %s185 = scalar_lea.vmem %s0, %s184
        %s186 = smul.u32 8, %s11
      $region36: #{bimla_head_forward.1} parent=31 // pred_fallthru
        _
    $region32: #{bimla_head_forward.1} parent=5 // pred_fallthru
      _
    %p187 = scmp.le.s32.totalorder 1, %s11
    %p188 = scmp.lt.s32.totalorder %s11, 3
    %p189 = pnand %p187, %p188
    %p190 = pneg %p189
    // Predicated region
    $region37: #{bimla_head_forward.1} parent=5 // pred_check
      _
    $region38: #{bimla_head_forward.1} parent=5 // pred_check_branch
      %192 = sbr.rel (%p189) target = $region40
    $region39: #{bimla_head_forward.1} parent=5 // pred_region
      %s193 = ssub.s32 %s11, 1
      %s194 = smul.u32 8, %s16
      %p195 = scmp.lt.s32.totalorder %s194, 15
      %s196 = scalar_select %p195, %s194, 15
      %s197 = smul.addr %s196, 4
      %s198 = scalar_lea.vmem %s0, %s197
      %p199 = pneg %p37
      %p200 = pneg %p34
      %p201 = pneg %p58
      %p202 = pneg %p55
      %p203 = pneg %p79
      %p204 = pneg %p76
      %p205 = pneg %p100
      %p206 = pneg %p97
      %p207 = pneg %p121
      %p208 = pneg %p118
      %p209 = pneg %p147
      %p210 = pneg %p144
      %s211 = smul.u32 8, %s16
      %p212 = scmp.lt.s32.totalorder %s211, 15
      %s213 = scalar_select %p212, %s211, 15
      %s214 = smul.addr %s213, 8
      %s215 = smul.addr %s214, 8
      %s216 = scalar_lea.vmem %s5, %s215
      %s217 = smul.u32 8, %s16
      %p218 = scmp.lt.s32.totalorder %s217, 15
      %s219 = scalar_select %p218, %s217, 15
      %s220 = smul.addr %s219, 4
      %s221 = scalar_lea.vmem %s0, %s220
      %s222 = smul.u32 8, %s16
      %s223 = smul.u32 8, %s16
      %p224 = scmp.lt.s32.totalorder %s223, 15
      %s225 = scalar_select %p224, %s223, 15
      %s226 = smul.addr %s225, 8
      %s227 = smul.addr %s226, 8
      %s228 = scalar_lea.vmem %s5, %s227
      %s229 = smul.u32 8, %s16
      %v231 = vld [vmem:[%s221] sm:$0xf]
      %v232 = vld [vmem:[%s221 + $0x4] sm:$0xf]
      %v233 = vld [vmem:[%s221 + $0x8] sm:$0xf]
      %v234 = vld [vmem:[%s221 + $0xc] sm:$0xf]
      %v235 = vld [vmem:[%s221 + $0x10] sm:$0xf]
      %v236 = vld [vmem:[%s221 + $0x14] sm:$0xf]
      %v237 = vld [vmem:[%s221 + $0x18] sm:$0xf]
      %v238 = vld [vmem:[%s221 + $0x1c] sm:$0xf]
      %v239 = vld [vmem:[%s2] sm:$0x1]
      %v240 = vld [vmem:[%s3] sm:$0xff]
      %v241 = vld [vmem:[%s3 + $0x8] sm:$0xff]
      %v242 = vld [vmem:[%s3 + $0x10] sm:$0xff]
      %v243 = vld [vmem:[%s3 + $0x18] sm:$0xff]
      %v244 = vld [vmem:[%s4] sm:$0x3]
      %v245 = vld [vmem:[%s1] sm:$0xf]
      %v246 = vld [vmem:[%s1 + $0x4] sm:$0xf]
      %v247 = vld [vmem:[%s1 + $0x8] sm:$0xf]
      %v248 = vld [vmem:[%s1 + $0xc] sm:$0xf]
      %v250 = vlaneseq
      %v251 = vshrl.u32 %v250, 7
      %v252 = vsub.s32 0, %v251
      %v253 = vrot.slane %v239, %v252
      %v263 = vunpack.c.l.b16 %v231
      %v264 = vunpack.c.l.b16 %v232
      %v265 = vunpack.c.l.b16 %v233
      %v266 = vunpack.c.l.b16 %v234
      %v267 = vunpack.c.l.b16 %v235
      %v268 = vunpack.c.l.b16 %v236
      %v269 = vunpack.c.l.b16 %v237
      %v270 = vunpack.c.l.b16 %v238
      %v271 = vpack.c.b16 %v264, %v263
      %v272 = vpack.c.b16 %v266, %v265
      %v273 = vpack.c.b16 %v268, %v267
      %v274 = vpack.c.b16 %v270, %v269
      %v279 = vunpack.c.l.b16 %v245
      %v280 = vunpack.c.l.b16 %v246
      %v281 = vunpack.c.l.b16 %v247
      %v282 = vunpack.c.l.b16 %v248
      %v283 = vpack.c.b16 %v280, %v279
      %v284 = vpack.c.b16 %v282, %v281
      %vm287 = vcmask 261120
      %v289 = vsel %vm287, %v271, 0
      %v292 = vsel %vm287, %v272, 0
      %v295 = vsel %vm287, %v273, 0
      %v298 = vsel %vm287, %v274, 0
      %300 = vmatprep.subr.bf16.mxu0 0
      %301 = vmatpush1.bf16.msra.mxu0 %v283
      %302 = vmatprep.subr.bf16.mxu0 0
      %303 = vmatpush1.bf16.msra.mxu0 %v284
      %304 = vmatprep.subr.bf16.mxu0 0
      %305 = vmatpush1.bf16.msra.mxu0 0
      %306 = vmatprep.subr.bf16.mxu0 0
      %307 = vmatpush1.bf16.msra.mxu0 0
      %308 = vmatprep.subr.bf16.mxu0 0
      %309 = vmatpush1.bf16.msra.mxu0 0
      %310 = vmatprep.subr.bf16.mxu0 0
      %311 = vmatpush1.bf16.msra.mxu0 0
      %312 = vmatprep.subr.bf16.mxu0 0
      %313 = vmatpush1.bf16.msra.mxu0 0
      %314 = vmatprep.subr.bf16.mxu0 0
      %315 = vmatpush1.bf16.msra.mxu0 0
      %316 = vmatprep.subr.bf16.mxu0 0
      %317 = vmatpush1.bf16.msra.mxu0 0
      %318 = vmatprep.subr.bf16.mxu0 0
      %319 = vmatpush1.bf16.msra.mxu0 0
      %320 = vmatprep.subr.bf16.mxu0 0
      %321 = vmatpush1.bf16.msra.mxu0 0
      %322 = vmatprep.subr.bf16.mxu0 0
      %323 = vmatpush1.bf16.msra.mxu0 0
      %324 = vmatprep.subr.bf16.mxu0 0
      %325 = vmatpush1.bf16.msra.mxu0 0
      %326 = vmatprep.subr.bf16.mxu0 0
      %327 = vmatpush1.bf16.msra.mxu0 0
      %328 = vmatprep.subr.bf16.mxu0 0
      %329 = vmatpush1.bf16.msra.mxu0 0
      %330 = vmatprep.subr.bf16.mxu0 0
      %331 = vmatpush1.bf16.msra.mxu0 0
      %332 = vmatprep.mubr.bf16.mxu0 0
      %333 = vmatmul.mubr.bf16.gmra.mrb[0].mxu0 %v289
      %v334 = vpop.f32.mrb[0].mxu0
      %v335 = vadd.f32 %v253, %v334
      %v336 = vpop.f32.mrb[0].mxu0
      %v337 = vpop.f32.mrb[0].mxu0
      %v338 = vadd.f32 %v253, %v337
      %v339 = vpop.f32.mrb[0].mxu0
      %340 = vmatprep.mubr.bf16.mxu0 0
      %341 = vmatmul.mubr.bf16.gmra.mrb[0].mxu0 %v292
      %v342 = vpop.f32.mrb[0].mxu0
      %v343 = vadd.f32 %v253, %v342
      %v344 = vpop.f32.mrb[0].mxu0
      %v345 = vpop.f32.mrb[0].mxu0
      %v346 = vadd.f32 %v253, %v345
      %v347 = vpop.f32.mrb[0].mxu0
      %348 = vmatprep.mubr.bf16.mxu0 0
      %349 = vmatmul.mubr.bf16.gmra.mrb[0].mxu0 %v295
      %v350 = vpop.f32.mrb[0].mxu0
      %v351 = vadd.f32 %v253, %v350
      %v352 = vpop.f32.mrb[0].mxu0
      %v353 = vpop.f32.mrb[0].mxu0
      %v354 = vadd.f32 %v253, %v353
      %v355 = vpop.f32.mrb[0].mxu0
      %356 = vmatprep.mubr.bf16.mxu0 0
      %357 = vmatmul.mubr.bf16.gmra.mrb[0].mxu0 %v298
      %v358 = vpop.f32.mrb[0].mxu0
      %v359 = vadd.f32 %v253, %v358
      %v360 = vpop.f32.mrb[0].mxu0
      %v361 = vpop.f32.mrb[0].mxu0
      %v362 = vadd.f32 %v253, %v361
      %v363 = vpop.f32.mrb[0].mxu0
      %364 = vdwg.mxu0
      %v365 = vmax.f32 %v335, 0.0
      %v366 = vmax.f32 %v338, 0.0
      %v367 = vmax.f32 %v343, 0.0
      %v368 = vmax.f32 %v346, 0.0
      %v369 = vmax.f32 %v351, 0.0
      %v370 = vmax.f32 %v354, 0.0
      %v371 = vmax.f32 %v359, 0.0
      %v372 = vmax.f32 %v362, 0.0
      %v373 = vpack.c.bf16 %v366, %v365
      %v374 = vpack.c.bf16 %v368, %v367
      %v375 = vpack.c.bf16 %v370, %v369
      %v376 = vpack.c.bf16 %v372, %v371
      %v378 = vlaneseq
      %v379 = vshrl.u32 %v378, 7
      %v380 = vsub.s32 0, %v379
      %v381 = vrot.slane %v244, %v380
      %v382 = vlaneseq
      %v383 = vshrl.u32 %v382, 7
      %v384 = vsub.s32 1, %v383
      %v385 = vrot.slane %v244, %v384
      %v392 = vunpack.c.l.b16 %v240
      %v393 = vunpack.c.h.b16 %v240
      %v394 = vunpack.c.l.b16 %v241
      %v395 = vunpack.c.h.b16 %v241
      %v396 = vunpack.c.l.b16 %v242
      %v397 = vunpack.c.h.b16 %v242
      %v398 = vunpack.c.l.b16 %v243
      %v399 = vunpack.c.h.b16 %v243
      %v400 = vpack.c.b16 %v394, %v392
      %v401 = vpack.c.b16 %v395, %v393
      %v402 = vpack.c.b16 %v398, %v396
      %v403 = vpack.c.b16 %v399, %v397
      %v409 = vsel %vm287, %v373, 0
      %v412 = vsel %vm287, %v374, 0
      %v415 = vsel %vm287, %v375, 0
      %v418 = vsel %vm287, %v376, 0
      %420 = vmatprep.subr.bf16.mxu0 %v401
      %421 = vmatpush1.bf16.msra.mxu0 %v400
      %422 = vmatprep.subr.bf16.mxu0 %v403
      %423 = vmatpush1.bf16.msra.mxu0 %v402
      %424 = vmatprep.subr.bf16.mxu0 0
      %425 = vmatpush1.bf16.msra.mxu0 0
      %426 = vmatprep.subr.bf16.mxu0 0
      %427 = vmatpush1.bf16.msra.mxu0 0
      %428 = vmatprep.subr.bf16.mxu0 0
      %429 = vmatpush1.bf16.msra.mxu0 0
      %430 = vmatprep.subr.bf16.mxu0 0
      %431 = vmatpush1.bf16.msra.mxu0 0
      %432 = vmatprep.subr.bf16.mxu0 0
      %433 = vmatpush1.bf16.msra.mxu0 0
      %434 = vmatprep.subr.bf16.mxu0 0
      %435 = vmatpush1.bf16.msra.mxu0 0
      %436 = vmatprep.subr.bf16.mxu0 0
      %437 = vmatpush1.bf16.msra.mxu0 0
      %438 = vmatprep.subr.bf16.mxu0 0
      %439 = vmatpush1.bf16.msra.mxu0 0
      %440 = vmatprep.subr.bf16.mxu0 0
      %441 = vmatpush1.bf16.msra.mxu0 0
      %442 = vmatprep.subr.bf16.mxu0 0
      %443 = vmatpush1.bf16.msra.mxu0 0
      %444 = vmatprep.subr.bf16.mxu0 0
      %445 = vmatpush1.bf16.msra.mxu0 0
      %446 = vmatprep.subr.bf16.mxu0 0
      %447 = vmatpush1.bf16.msra.mxu0 0
      %448 = vmatprep.subr.bf16.mxu0 0
      %449 = vmatpush1.bf16.msra.mxu0 0
      %450 = vmatprep.subr.bf16.mxu0 0
      %451 = vmatpush1.bf16.msra.mxu0 0
      %452 = vmatprep.mubr.bf16.mxu0 0
      %453 = vmatmul.mubr.bf16.gmra.mrb[0].mxu0 %v409
      %v454 = vpop.f32.mrb[0].mxu0
      %v455 = vadd.f32 %v381, %v454
      %v456 = vpop.f32.mrb[0].mxu0
      %v457 = vadd.f32 %v385, %v456
      %v458 = vpop.f32.mrb[0].mxu0
      %v459 = vadd.f32 %v381, %v458
      %v460 = vpop.f32.mrb[0].mxu0
      %v461 = vadd.f32 %v385, %v460
      %462 = vmatprep.mubr.bf16.mxu0 0
      %463 = vmatmul.mubr.bf16.gmra.mrb[0].mxu0 %v412
      %v464 = vpop.f32.mrb[0].mxu0
      %v465 = vadd.f32 %v381, %v464
      %v466 = vpop.f32.mrb[0].mxu0
      %v467 = vadd.f32 %v385, %v466
      %v468 = vpop.f32.mrb[0].mxu0
      %v469 = vadd.f32 %v381, %v468
      %v470 = vpop.f32.mrb[0].mxu0
      %v471 = vadd.f32 %v385, %v470
      %472 = vmatprep.mubr.bf16.mxu0 0
      %473 = vmatmul.mubr.bf16.gmra.mrb[0].mxu0 %v415
      %v474 = vpop.f32.mrb[0].mxu0
      %v475 = vadd.f32 %v381, %v474
      %v476 = vpop.f32.mrb[0].mxu0
      %v477 = vadd.f32 %v385, %v476
      %v478 = vpop.f32.mrb[0].mxu0
      %v479 = vadd.f32 %v381, %v478
      %v480 = vpop.f32.mrb[0].mxu0
      %v481 = vadd.f32 %v385, %v480
      %482 = vmatprep.mubr.bf16.mxu0 0
      %483 = vmatmul.mubr.bf16.gmra.mrb[0].mxu0 %v418
      %v484 = vpop.f32.mrb[0].mxu0
      %v485 = vadd.f32 %v381, %v484
      %v486 = vpop.f32.mrb[0].mxu0
      %v487 = vadd.f32 %v385, %v486
      %v488 = vpop.f32.mrb[0].mxu0
      %v489 = vadd.f32 %v381, %v488
      %v490 = vpop.f32.mrb[0].mxu0
      %v491 = vadd.f32 %v385, %v490
      %492 = vdwg.mxu0
      %v493 = vmax.f32 %v455, 0.0
      %v494 = vmax.f32 %v457, 0.0
      %v495 = vmax.f32 %v459, 0.0
      %v496 = vmax.f32 %v461, 0.0
      %v497 = vmax.f32 %v465, 0.0
      %v498 = vmax.f32 %v467, 0.0
      %v499 = vmax.f32 %v469, 0.0
      %v500 = vmax.f32 %v471, 0.0
      %v501 = vmax.f32 %v475, 0.0
      %v502 = vmax.f32 %v477, 0.0
      %v503 = vmax.f32 %v479, 0.0
      %v504 = vmax.f32 %v481, 0.0
      %v505 = vmax.f32 %v485, 0.0
      %v506 = vmax.f32 %v487, 0.0
      %v507 = vmax.f32 %v489, 0.0
      %v508 = vmax.f32 %v491, 0.0
      %509 = vst [vmem:[%s228] sm:$0xff] %v493
      %510 = vst [vmem:[%s228 + $0x8] sm:$0xff] %v494
      %511 = vst [vmem:[%s228 + $0x40] sm:$0xff] %v495
      %512 = vst [vmem:[%s228 + $0x48] sm:$0xff] %v496
      %513 = vst [vmem:[%s228 + $0x80] sm:$0xff] %v497
      %514 = vst [vmem:[%s228 + $0x88] sm:$0xff] %v498
      %515 = vst [vmem:[%s228 + $0xc0] sm:$0xff] %v499
      %516 = vst [vmem:[%s228 + $0xc8] sm:$0xff] %v500
      %517 = vst [vmem:[%s228 + $0x100] sm:$0xff] %v501
      %518 = vst [vmem:[%s228 + $0x108] sm:$0xff] %v502
      %519 = vst [vmem:[%s228 + $0x140] sm:$0xff] %v503
      %520 = vst [vmem:[%s228 + $0x148] sm:$0xff] %v504
      %521 = vst [vmem:[%s228 + $0x180] sm:$0xff] %v505
      %522 = vst [vmem:[%s228 + $0x188] sm:$0xff] %v506
      %523 = vst [vmem:[%s228 + $0x1c0] sm:$0xff] %v507
      %524 = vst [vmem:[%s228 + $0x1c8] sm:$0xff] %v508
      %s525 = scalar_lea.vmem %s1, 16
      %v526 = vld [vmem:[%s525] sm:$0xf]
      %v527 = vld [vmem:[%s525 + $0x4] sm:$0xf]
      %v528 = vld [vmem:[%s525 + $0x8] sm:$0xf]
      %v529 = vld [vmem:[%s525 + $0xc] sm:$0xf]
      %v534 = vunpack.c.l.b16 %v526
      %v535 = vunpack.c.l.b16 %v527
      %v536 = vunpack.c.l.b16 %v528
      %v537 = vunpack.c.l.b16 %v529
      %v538 = vpack.c.b16 %v535, %v534
      %v539 = vpack.c.b16 %v537, %v536
      %542 = vmatprep.subr.bf16.mxu0 0
      %543 = vmatpush1.bf16.msra.mxu0 %v538
      %544 = vmatprep.subr.bf16.mxu0 0
      %545 = vmatpush1.bf16.msra.mxu0 %v539
      %546 = vmatprep.subr.bf16.mxu0 0
      %547 = vmatpush1.bf16.msra.mxu0 0
      %548 = vmatprep.subr.bf16.mxu0 0
      %549 = vmatpush1.bf16.msra.mxu0 0
      %550 = vmatprep.subr.bf16.mxu0 0
      %551 = vmatpush1.bf16.msra.mxu0 0
      %552 = vmatprep.subr.bf16.mxu0 0
      %553 = vmatpush1.bf16.msra.mxu0 0
      %554 = vmatprep.subr.bf16.mxu0 0
      %555 = vmatpush1.bf16.msra.mxu0 0
      %556 = vmatprep.subr.bf16.mxu0 0
      %557 = vmatpush1.bf16.msra.mxu0 0
      %558 = vmatprep.subr.bf16.mxu0 0
      %559 = vmatpush1.bf16.msra.mxu0 0
      %560 = vmatprep.subr.bf16.mxu0 0
      %561 = vmatpush1.bf16.msra.mxu0 0
      %562 = vmatprep.subr.bf16.mxu0 0
      %563 = vmatpush1.bf16.msra.mxu0 0
      %564 = vmatprep.subr.bf16.mxu0 0
      %565 = vmatpush1.bf16.msra.mxu0 0
      %566 = vmatprep.subr.bf16.mxu0 0
      %567 = vmatpush1.bf16.msra.mxu0 0
      %568 = vmatprep.subr.bf16.mxu0 0
      %569 = vmatpush1.bf16.msra.mxu0 0
      %570 = vmatprep.subr.bf16.mxu0 0
      %571 = vmatpush1.bf16.msra.mxu0 0
      %572 = vmatprep.subr.bf16.mxu0 0
      %573 = vmatpush1.bf16.msra.mxu0 0
      %574 = vmatprep.mubr.bf16.mxu0 0
      %575 = vmatmul.mubr.bf16.gmra.mrb[0].mxu0 %v289
      %v576 = vpop.f32.mrb[0].mxu0
      %v577 = vadd.f32 %v253, %v576
      %v578 = vpop.f32.mrb[0].mxu0
      %v579 = vpop.f32.mrb[0].mxu0
      %v580 = vadd.f32 %v253, %v579
      %v581 = vpop.f32.mrb[0].mxu0
      %582 = vmatprep.mubr.bf16.mxu0 0
      %583 = vmatmul.mubr.bf16.gmra.mrb[0].mxu0 %v292
      %v584 = vpop.f32.mrb[0].mxu0
      %v585 = vadd.f32 %v253, %v584
      %v586 = vpop.f32.mrb[0].mxu0
      %v587 = vpop.f32.mrb[0].mxu0
      %v588 = vadd.f32 %v253, %v587
      %v589 = vpop.f32.mrb[0].mxu0
      %590 = vmatprep.mubr.bf16.mxu0 0
      %591 = vmatmul.mubr.bf16.gmra.mrb[0].mxu0 %v295
      %v592 = vpop.f32.mrb[0].mxu0
      %v593 = vadd.f32 %v253, %v592
      %v594 = vpop.f32.mrb[0].mxu0
      %v595 = vpop.f32.mrb[0].mxu0
      %v596 = vadd.f32 %v253, %v595
      %v597 = vpop.f32.mrb[0].mxu0
      %598 = vmatprep.mubr.bf16.mxu0 0
      %599 = vmatmul.mubr.bf16.gmra.mrb[0].mxu0 %v298
      %v600 = vpop.f32.mrb[0].mxu0
      %v601 = vadd.f32 %v253, %v600
      %v602 = vpop.f32.mrb[0].mxu0
      %v603 = vpop.f32.mrb[0].mxu0
      %v604 = vadd.f32 %v253, %v603
      %v605 = vpop.f32.mrb[0].mxu0
      %606 = vdwg.mxu0
      %v607 = vmax.f32 %v577, 0.0
      %v608 = vmax.f32 %v580, 0.0
      %v609 = vmax.f32 %v585, 0.0
      %v610 = vmax.f32 %v588, 0.0
      %v611 = vmax.f32 %v593, 0.0
      %v612 = vmax.f32 %v596, 0.0
      %v613 = vmax.f32 %v601, 0.0
      %v614 = vmax.f32 %v604, 0.0
      %v615 = vpack.c.bf16 %v608, %v607
      %v616 = vpack.c.bf16 %v610, %v609
      %v617 = vpack.c.bf16 %v612, %v611
      %v618 = vpack.c.bf16 %v614, %v613
      %v620 = vsel %vm287, %v615, 0
      %v623 = vsel %vm287, %v616, 0
      %v626 = vsel %vm287, %v617, 0
      %v629 = vsel %vm287, %v618, 0
      %631 = vmatprep.subr.bf16.mxu0 %v401
      %632 = vmatpush1.bf16.msra.mxu0 %v400
      %633 = vmatprep.subr.bf16.mxu0 %v403
      %634 = vmatpush1.bf16.msra.mxu0 %v402
      %635 = vmatprep.subr.bf16.mxu0 0
      %636 = vmatpush1.bf16.msra.mxu0 0
      %637 = vmatprep.subr.bf16.mxu0 0
      %638 = vmatpush1.bf16.msra.mxu0 0
      %639 = vmatprep.subr.bf16.mxu0 0
      %640 = vmatpush1.bf16.msra.mxu0 0
      %641 = vmatprep.subr.bf16.mxu0 0
      %642 = vmatpush1.bf16.msra.mxu0 0
      %643 = vmatprep.subr.bf16.mxu0 0
      %644 = vmatpush1.bf16.msra.mxu0 0
      %645 = vmatprep.subr.bf16.mxu0 0
      %646 = vmatpush1.bf16.msra.mxu0 0
      %647 = vmatprep.subr.bf16.mxu0 0
      %648 = vmatpush1.bf16.msra.mxu0 0
      %649 = vmatprep.subr.bf16.mxu0 0
      %650 = vmatpush1.bf16.msra.mxu0 0
      %651 = vmatprep.subr.bf16.mxu0 0
      %652 = vmatpush1.bf16.msra.mxu0 0
      %653 = vmatprep.subr.bf16.mxu0 0
      %654 = vmatpush1.bf16.msra.mxu0 0
      %655 = vmatprep.subr.bf16.mxu0 0
      %656 = vmatpush1.bf16.msra.mxu0 0
      %657 = vmatprep.subr.bf16.mxu0 0
      %658 = vmatpush1.bf16.msra.mxu0 0
      %659 = vmatprep.subr.bf16.mxu0 0
      %660 = vmatpush1.bf16.msra.mxu0 0
      %661 = vmatprep.subr.bf16.mxu0 0
      %662 = vmatpush1.bf16.msra.mxu0 0
      %663 = vmatprep.mubr.bf16.mxu0 0
      %664 = vmatmul.mubr.bf16.gmra.mrb[0].mxu0 %v620
      %v665 = vpop.f32.mrb[0].mxu0
      %v666 = vadd.f32 %v381, %v665
      %v667 = vpop.f32.mrb[0].mxu0
      %v668 = vadd.f32 %v385, %v667
      %v669 = vpop.f32.mrb[0].mxu0
      %v670 = vadd.f32 %v381, %v669
      %v671 = vpop.f32.mrb[0].mxu0
      %v672 = vadd.f32 %v385, %v671
      %673 = vmatprep.mubr.bf16.mxu0 0
      %674 = vmatmul.mubr.bf16.gmra.mrb[0].mxu0 %v623
      %v675 = vpop.f32.mrb[0].mxu0
      %v676 = vadd.f32 %v381, %v675
      %v677 = vpop.f32.mrb[0].mxu0
      %v678 = vadd.f32 %v385, %v677
      %v679 = vpop.f32.mrb[0].mxu0
      %v680 = vadd.f32 %v381, %v679
      %v681 = vpop.f32.mrb[0].mxu0
      %v682 = vadd.f32 %v385, %v681
      %683 = vmatprep.mubr.bf16.mxu0 0
      %684 = vmatmul.mubr.bf16.gmra.mrb[0].mxu0 %v626
      %v685 = vpop.f32.mrb[0].mxu0
      %v686 = vadd.f32 %v381, %v685
      %v687 = vpop.f32.mrb[0].mxu0
      %v688 = vadd.f32 %v385, %v687
      %v689 = vpop.f32.mrb[0].mxu0
      %v690 = vadd.f32 %v381, %v689
      %v691 = vpop.f32.mrb[0].mxu0
      %v692 = vadd.f32 %v385, %v691
      %693 = vmatprep.mubr.bf16.mxu0 0
      %694 = vmatmul.mubr.bf16.gmra.mrb[0].mxu0 %v629
      %v695 = vpop.f32.mrb[0].mxu0
      %v696 = vadd.f32 %v381, %v695
      %v697 = vpop.f32.mrb[0].mxu0
      %v698 = vadd.f32 %v385, %v697
      %v699 = vpop.f32.mrb[0].mxu0
      %v700 = vadd.f32 %v381, %v699
      %v701 = vpop.f32.mrb[0].mxu0
      %v702 = vadd.f32 %v385, %v701
      %703 = vdwg.mxu0
      %v704 = vmax.f32 %v666, 0.0
      %v705 = vmax.f32 %v668, 0.0
      %v706 = vmax.f32 %v670, 0.0
      %v707 = vmax.f32 %v672, 0.0
      %v708 = vmax.f32 %v676, 0.0
      %v709 = vmax.f32 %v678, 0.0
      %v710 = vmax.f32 %v680, 0.0
      %v711 = vmax.f32 %v682, 0.0
      %v712 = vmax.f32 %v686, 0.0
      %v713 = vmax.f32 %v688, 0.0
      %v714 = vmax.f32 %v690, 0.0
      %v715 = vmax.f32 %v692, 0.0
      %v716 = vmax.f32 %v696, 0.0
      %v717 = vmax.f32 %v698, 0.0
      %v718 = vmax.f32 %v700, 0.0
      %v719 = vmax.f32 %v702, 0.0
      %720 = vst [vmem:[%s228 + $0x10] sm:$0xff] %v704
      %721 = vst [vmem:[%s228 + $0x18] sm:$0xff] %v705
      %722 = vst [vmem:[%s228 + $0x50] sm:$0xff] %v706
      %723 = vst [vmem:[%s228 + $0x58] sm:$0xff] %v707
      %724 = vst [vmem:[%s228 + $0x90] sm:$0xff] %v708
      %725 = vst [vmem:[%s228 + $0x98] sm:$0xff] %v709
      %726 = vst [vmem:[%s228 + $0xd0] sm:$0xff] %v710
      %727 = vst [vmem:[%s228 + $0xd8] sm:$0xff] %v711
      %728 = vst [vmem:[%s228 + $0x110] sm:$0xff] %v712
      %729 = vst [vmem:[%s228 + $0x118] sm:$0xff] %v713
      %730 = vst [vmem:[%s228 + $0x150] sm:$0xff] %v714
      %731 = vst [vmem:[%s228 + $0x158] sm:$0xff] %v715
      %732 = vst [vmem:[%s228 + $0x190] sm:$0xff] %v716
      %733 = vst [vmem:[%s228 + $0x198] sm:$0xff] %v717
      %734 = vst [vmem:[%s228 + $0x1d0] sm:$0xff] %v718
      %735 = vst [vmem:[%s228 + $0x1d8] sm:$0xff] %v719
      %s736 = scalar_lea.vmem %s1, 32
      %v737 = vld [vmem:[%s736] sm:$0xf]
      %v738 = vld [vmem:[%s736 + $0x4] sm:$0xf]
      %v739 = vld [vmem:[%s736 + $0x8] sm:$0xf]
      %v740 = vld [vmem:[%s736 + $0xc] sm:$0xf]
      %v745 = vunpack.c.l.b16 %v737
      %v746 = vunpack.c.l.b16 %v738
      %v747 = vunpack.c.l.b16 %v739
      %v748 = vunpack.c.l.b16 %v740
      %v749 = vpack.c.b16 %v746, %v745
      %v750 = vpack.c.b16 %v748, %v747
      %753 = vmatprep.subr.bf16.mxu0 0
      %754 = vmatpush1.bf16.msra.mxu0 %v749
      %755 = vmatprep.subr.bf16.mxu0 0
      %756 = vmatpush1.bf16.msra.mxu0 %v750
      %757 = vmatprep.subr.bf16.mxu0 0
      %758 = vmatpush1.bf16.msra.mxu0 0
      %759 = vmatprep.subr.bf16.mxu0 0
      %760 = vmatpush1.bf16.msra.mxu0 0
      %761 = vmatprep.subr.bf16.mxu0 0
      %762 = vmatpush1.bf16.msra.mxu0 0
      %763 = vmatprep.subr.bf16.mxu0 0
      %764 = vmatpush1.bf16.msra.mxu0 0
      %765 = vmatprep.subr.bf16.mxu0 0
      %766 = vmatpush1.bf16.msra.mxu0 0
      %767 = vmatprep.subr.bf16.mxu0 0
      %768 = vmatpush1.bf16.msra.mxu0 0
      %769 = vmatprep.subr.bf16.mxu0 0
      %770 = vmatpush1.bf16.msra.mxu0 0
      %771 = vmatprep.subr.bf16.mxu0 0
      %772 = vmatpush1.bf16.msra.mxu0 0
      %773 = vmatprep.subr.bf16.mxu0 0
      %774 = vmatpush1.bf16.msra.mxu0 0
      %775 = vmatprep.subr.bf16.mxu0 0
      %776 = vmatpush1.bf16.msra.mxu0 0
      %777 = vmatprep.subr.bf16.mxu0 0
      %778 = vmatpush1.bf16.msra.mxu0 0
      %779 = vmatprep.subr.bf16.mxu0 0
      %780 = vmatpush1.bf16.msra.mxu0 0
      %781 = vmatprep.subr.bf16.mxu0 0
      %782 = vmatpush1.bf16.msra.mxu0 0
      %783 = vmatprep.subr.bf16.mxu0 0
      %784 = vmatpush1.bf16.msra.mxu0 0
      %785 = vmatprep.mubr.bf16.mxu0 0
      %786 = vmatmul.mubr.bf16.gmra.mrb[0].mxu0 %v289
      %v787 = vpop.f32.mrb[0].mxu0
      %v788 = vadd.f32 %v253, %v787
      %v789 = vpop.f32.mrb[0].mxu0
      %v790 = vpop.f32.mrb[0].mxu0
      %v791 = vadd.f32 %v253, %v790
      %v792 = vpop.f32.mrb[0].mxu0
      %793 = vmatprep.mubr.bf16.mxu0 0
      %794 = vmatmul.mubr.bf16.gmra.mrb[0].mxu0 %v292
      %v795 = vpop.f32.mrb[0].mxu0
      %v796 = vadd.f32 %v253, %v795
      %v797 = vpop.f32.mrb[0].mxu0
      %v798 = vpop.f32.mrb[0].mxu0
      %v799 = vadd.f32 %v253, %v798
      %v800 = vpop.f32.mrb[0].mxu0
      %801 = vmatprep.mubr.bf16.mxu0 0
      %802 = vmatmul.mubr.bf16.gmra.mrb[0].mxu0 %v295
      %v803 = vpop.f32.mrb[0].mxu0
      %v804 = vadd.f32 %v253, %v803
      %v805 = vpop.f32.mrb[0].mxu0
      %v806 = vpop.f32.mrb[0].mxu0
      %v807 = vadd.f32 %v253, %v806
      %v808 = vpop.f32.mrb[0].mxu0
      %809 = vmatprep.mubr.bf16.mxu0 0
      %810 = vmatmul.mubr.bf16.gmra.mrb[0].mxu0 %v298
      %v811 = vpop.f32.mrb[0].mxu0
      %v812 = vadd.f32 %v253, %v811
      %v813 = vpop.f32.mrb[0].mxu0
      %v814 = vpop.f32.mrb[0].mxu0
      %v815 = vadd.f32 %v253, %v814
      %v816 = vpop.f32.mrb[0].mxu0
      %817 = vdwg.mxu0
      %v818 = vmax.f32 %v788, 0.0
      %v819 = vmax.f32 %v791, 0.0
      %v820 = vmax.f32 %v796, 0.0
      %v821 = vmax.f32 %v799, 0.0
      %v822 = vmax.f32 %v804, 0.0
      %v823 = vmax.f32 %v807, 0.0
      %v824 = vmax.f32 %v812, 0.0
      %v825 = vmax.f32 %v815, 0.0
      %v826 = vpack.c.bf16 %v819, %v818
      %v827 = vpack.c.bf16 %v821, %v820
      %v828 = vpack.c.bf16 %v823, %v822
      %v829 = vpack.c.bf16 %v825, %v824
      %v831 = vsel %vm287, %v826, 0
      %v834 = vsel %vm287, %v827, 0
      %v837 = vsel %vm287, %v828, 0
      %v840 = vsel %vm287, %v829, 0
      %842 = vmatprep.subr.bf16.mxu0 %v401
      %843 = vmatpush1.bf16.msra.mxu0 %v400
      %844 = vmatprep.subr.bf16.mxu0 %v403
      %845 = vmatpush1.bf16.msra.mxu0 %v402
      %846 = vmatprep.subr.bf16.mxu0 0
      %847 = vmatpush1.bf16.msra.mxu0 0
      %848 = vmatprep.subr.bf16.mxu0 0
      %849 = vmatpush1.bf16.msra.mxu0 0
      %850 = vmatprep.subr.bf16.mxu0 0
      %851 = vmatpush1.bf16.msra.mxu0 0
      %852 = vmatprep.subr.bf16.mxu0 0
      %853 = vmatpush1.bf16.msra.mxu0 0
      %854 = vmatprep.subr.bf16.mxu0 0
      %855 = vmatpush1.bf16.msra.mxu0 0
      %856 = vmatprep.subr.bf16.mxu0 0
      %857 = vmatpush1.bf16.msra.mxu0 0
      %858 = vmatprep.subr.bf16.mxu0 0
      %859 = vmatpush1.bf16.msra.mxu0 0
      %860 = vmatprep.subr.bf16.mxu0 0
      %861 = vmatpush1.bf16.msra.mxu0 0
      %862 = vmatprep.subr.bf16.mxu0 0
      %863 = vmatpush1.bf16.msra.mxu0 0
      %864 = vmatprep.subr.bf16.mxu0 0
      %865 = vmatpush1.bf16.msra.mxu0 0
      %866 = vmatprep.subr.bf16.mxu0 0
      %867 = vmatpush1.bf16.msra.mxu0 0
      %868 = vmatprep.subr.bf16.mxu0 0
      %869 = vmatpush1.bf16.msra.mxu0 0
      %870 = vmatprep.subr.bf16.mxu0 0
      %871 = vmatpush1.bf16.msra.mxu0 0
      %872 = vmatprep.subr.bf16.mxu0 0
      %873 = vmatpush1.bf16.msra.mxu0 0
      %874 = vmatprep.mubr.bf16.mxu0 0
      %875 = vmatmul.mubr.bf16.gmra.mrb[0].mxu0 %v831
      %v876 = vpop.f32.mrb[0].mxu0
      %v877 = vadd.f32 %v381, %v876
      %v878 = vpop.f32.mrb[0].mxu0
      %v879 = vadd.f32 %v385, %v878
      %v880 = vpop.f32.mrb[0].mxu0
      %v881 = vadd.f32 %v381, %v880
      %v882 = vpop.f32.mrb[0].mxu0
      %v883 = vadd.f32 %v385, %v882
      %884 = vmatprep.mubr.bf16.mxu0 0
      %885 = vmatmul.mubr.bf16.gmra.mrb[0].mxu0 %v834
      %v886 = vpop.f32.mrb[0].mxu0
      %v887 = vadd.f32 %v381, %v886
      %v888 = vpop.f32.mrb[0].mxu0
      %v889 = vadd.f32 %v385, %v888
      %v890 = vpop.f32.mrb[0].mxu0
      %v891 = vadd.f32 %v381, %v890
      %v892 = vpop.f32.mrb[0].mxu0
      %v893 = vadd.f32 %v385, %v892
      %894 = vmatprep.mubr.bf16.mxu0 0
      %895 = vmatmul.mubr.bf16.gmra.mrb[0].mxu0 %v837
      %v896 = vpop.f32.mrb[0].mxu0
      %v897 = vadd.f32 %v381, %v896
      %v898 = vpop.f32.mrb[0].mxu0
      %v899 = vadd.f32 %v385, %v898
      %v900 = vpop.f32.mrb[0].mxu0
      %v901 = vadd.f32 %v381, %v900
      %v902 = vpop.f32.mrb[0].mxu0
      %v903 = vadd.f32 %v385, %v902
      %904 = vmatprep.mubr.bf16.mxu0 0
      %905 = vmatmul.mubr.bf16.gmra.mrb[0].mxu0 %v840
      %v906 = vpop.f32.mrb[0].mxu0
      %v907 = vadd.f32 %v381, %v906
      %v908 = vpop.f32.mrb[0].mxu0
      %v909 = vadd.f32 %v385, %v908
      %v910 = vpop.f32.mrb[0].mxu0
      %v911 = vadd.f32 %v381, %v910
      %v912 = vpop.f32.mrb[0].mxu0
      %v913 = vadd.f32 %v385, %v912
      %914 = vdwg.mxu0
      %v915 = vmax.f32 %v877, 0.0
      %v916 = vmax.f32 %v879, 0.0
      %v917 = vmax.f32 %v881, 0.0
      %v918 = vmax.f32 %v883, 0.0
      %v919 = vmax.f32 %v887, 0.0
      %v920 = vmax.f32 %v889, 0.0
      %v921 = vmax.f32 %v891, 0.0
      %v922 = vmax.f32 %v893, 0.0
      %v923 = vmax.f32 %v897, 0.0
      %v924 = vmax.f32 %v899, 0.0
      %v925 = vmax.f32 %v901, 0.0
      %v926 = vmax.f32 %v903, 0.0
      %v927 = vmax.f32 %v907, 0.0
      %v928 = vmax.f32 %v909, 0.0
      %v929 = vmax.f32 %v911, 0.0
      %v930 = vmax.f32 %v913, 0.0
      %931 = vst [vmem:[%s228 + $0x20] sm:$0xff] %v915
      %932 = vst [vmem:[%s228 + $0x28] sm:$0xff] %v916
      %933 = vst [vmem:[%s228 + $0x60] sm:$0xff] %v917
      %934 = vst [vmem:[%s228 + $0x68] sm:$0xff] %v918
      %935 = vst [vmem:[%s228 + $0xa0] sm:$0xff] %v919
      %936 = vst [vmem:[%s228 + $0xa8] sm:$0xff] %v920
      %937 = vst [vmem:[%s228 + $0xe0] sm:$0xff] %v921
      %938 = vst [vmem:[%s228 + $0xe8] sm:$0xff] %v922
      %939 = vst [vmem:[%s228 + $0x120] sm:$0xff] %v923
      %940 = vst [vmem:[%s228 + $0x128] sm:$0xff] %v924
      %941 = vst [vmem:[%s228 + $0x160] sm:$0xff] %v925
      %942 = vst [vmem:[%s228 + $0x168] sm:$0xff] %v926
      %943 = vst [vmem:[%s228 + $0x1a0] sm:$0xff] %v927
      %944 = vst [vmem:[%s228 + $0x1a8] sm:$0xff] %v928
      %945 = vst [vmem:[%s228 + $0x1e0] sm:$0xff] %v929
      %946 = vst [vmem:[%s228 + $0x1e8] sm:$0xff] %v930
      %s947 = scalar_lea.vmem %s1, 48
      %v948 = vld [vmem:[%s947] sm:$0xf]
      %v949 = vld [vmem:[%s947 + $0x4] sm:$0xf]
      %v950 = vld [vmem:[%s947 + $0x8] sm:$0xf]
      %v951 = vld [vmem:[%s947 + $0xc] sm:$0xf]
      %v956 = vunpack.c.l.b16 %v948
      %v957 = vunpack.c.l.b16 %v949
      %v958 = vunpack.c.l.b16 %v950
      %v959 = vunpack.c.l.b16 %v951
      %v960 = vpack.c.b16 %v957, %v956
      %v961 = vpack.c.b16 %v959, %v958
      %964 = vmatprep.subr.bf16.mxu0 0
      %965 = vmatpush1.bf16.msra.mxu0 %v960
      %966 = vmatprep.subr.bf16.mxu0 0
      %967 = vmatpush1.bf16.msra.mxu0 %v961
      %968 = vmatprep.subr.bf16.mxu0 0
      %969 = vmatpush1.bf16.msra.mxu0 0
      %970 = vmatprep.subr.bf16.mxu0 0
      %971 = vmatpush1.bf16.msra.mxu0 0
      %972 = vmatprep.subr.bf16.mxu0 0
      %973 = vmatpush1.bf16.msra.mxu0 0
      %974 = vmatprep.subr.bf16.mxu0 0
      %975 = vmatpush1.bf16.msra.mxu0 0
      %976 = vmatprep.subr.bf16.mxu0 0
      %977 = vmatpush1.bf16.msra.mxu0 0
      %978 = vmatprep.subr.bf16.mxu0 0
      %979 = vmatpush1.bf16.msra.mxu0 0
      %980 = vmatprep.subr.bf16.mxu0 0
      %981 = vmatpush1.bf16.msra.mxu0 0
      %982 = vmatprep.subr.bf16.mxu0 0
      %983 = vmatpush1.bf16.msra.mxu0 0
      %984 = vmatprep.subr.bf16.mxu0 0
      %985 = vmatpush1.bf16.msra.mxu0 0
      %986 = vmatprep.subr.bf16.mxu0 0
      %987 = vmatpush1.bf16.msra.mxu0 0
      %988 = vmatprep.subr.bf16.mxu0 0
      %989 = vmatpush1.bf16.msra.mxu0 0
      %990 = vmatprep.subr.bf16.mxu0 0
      %991 = vmatpush1.bf16.msra.mxu0 0
      %992 = vmatprep.subr.bf16.mxu0 0
      %993 = vmatpush1.bf16.msra.mxu0 0
      %994 = vmatprep.subr.bf16.mxu0 0
      %995 = vmatpush1.bf16.msra.mxu0 0
      %996 = vmatprep.mubr.bf16.mxu0 0
      %997 = vmatmul.mubr.bf16.gmra.mrb[0].mxu0 %v289
      %v998 = vpop.f32.mrb[0].mxu0
      %v999 = vadd.f32 %v253, %v998
      %v1000 = vpop.f32.mrb[0].mxu0
      %v1001 = vpop.f32.mrb[0].mxu0
      %v1002 = vadd.f32 %v253, %v1001
      %v1003 = vpop.f32.mrb[0].mxu0
      %1004 = vmatprep.mubr.bf16.mxu0 0
      %1005 = vmatmul.mubr.bf16.gmra.mrb[0].mxu0 %v292
      %v1006 = vpop.f32.mrb[0].mxu0
      %v1007 = vadd.f32 %v253, %v1006
      %v1008 = vpop.f32.mrb[0].mxu0
      %v1009 = vpop.f32.mrb[0].mxu0
      %v1010 = vadd.f32 %v253, %v1009
      %v1011 = vpop.f32.mrb[0].mxu0
      %1012 = vmatprep.mubr.bf16.mxu0 0
      %1013 = vmatmul.mubr.bf16.gmra.mrb[0].mxu0 %v295
      %v1014 = vpop.f32.mrb[0].mxu0
      %v1015 = vadd.f32 %v253, %v1014
      %v1016 = vpop.f32.mrb[0].mxu0
      %v1017 = vpop.f32.mrb[0].mxu0
      %v1018 = vadd.f32 %v253, %v1017
      %v1019 = vpop.f32.mrb[0].mxu0
      %1020 = vmatprep.mubr.bf16.mxu0 0
      %1021 = vmatmul.mubr.bf16.gmra.mrb[0].mxu0 %v298
      %v1022 = vpop.f32.mrb[0].mxu0
      %v1023 = vadd.f32 %v253, %v1022
      %v1024 = vpop.f32.mrb[0].mxu0
      %v1025 = vpop.f32.mrb[0].mxu0
      %v1026 = vadd.f32 %v253, %v1025
      %v1027 = vpop.f32.mrb[0].mxu0
      %1028 = vdwg.mxu0
      %v1029 = vmax.f32 %v999, 0.0
      %v1030 = vmax.f32 %v1002, 0.0
      %v1031 = vmax.f32 %v1007, 0.0
      %v1032 = vmax.f32 %v1010, 0.0
      %v1033 = vmax.f32 %v1015, 0.0
      %v1034 = vmax.f32 %v1018, 0.0
      %v1035 = vmax.f32 %v1023, 0.0
      %v1036 = vmax.f32 %v1026, 0.0
      %v1037 = vpack.c.bf16 %v1030, %v1029
      %v1038 = vpack.c.bf16 %v1032, %v1031
      %v1039 = vpack.c.bf16 %v1034, %v1033
      %v1040 = vpack.c.bf16 %v1036, %v1035
      %v1042 = vsel %vm287, %v1037, 0
      %v1045 = vsel %vm287, %v1038, 0
      %v1048 = vsel %vm287, %v1039, 0
      %v1051 = vsel %vm287, %v1040, 0
      %1053 = vmatprep.subr.bf16.mxu0 %v401
      %1054 = vmatpush1.bf16.msra.mxu0 %v400
      %1055 = vmatprep.subr.bf16.mxu0 %v403
      %1056 = vmatpush1.bf16.msra.mxu0 %v402
      %1057 = vmatprep.subr.bf16.mxu0 0
      %1058 = vmatpush1.bf16.msra.mxu0 0
      %1059 = vmatprep.subr.bf16.mxu0 0
      %1060 = vmatpush1.bf16.msra.mxu0 0
      %1061 = vmatprep.subr.bf16.mxu0 0
      %1062 = vmatpush1.bf16.msra.mxu0 0
      %1063 = vmatprep.subr.bf16.mxu0 0
      %1064 = vmatpush1.bf16.msra.mxu0 0
      %1065 = vmatprep.subr.bf16.mxu0 0
      %1066 = vmatpush1.bf16.msra.mxu0 0
      %1067 = vmatprep.subr.bf16.mxu0 0
      %1068 = vmatpush1.bf16.msra.mxu0 0
      %1069 = vmatprep.subr.bf16.mxu0 0
      %1070 = vmatpush1.bf16.msra.mxu0 0
      %1071 = vmatprep.subr.bf16.mxu0 0
      %1072 = vmatpush1.bf16.msra.mxu0 0
      %1073 = vmatprep.subr.bf16.mxu0 0
      %1074 = vmatpush1.bf16.msra.mxu0 0
      %1075 = vmatprep.subr.bf16.mxu0 0
      %1076 = vmatpush1.bf16.msra.mxu0 0
      %1077 = vmatprep.subr.bf16.mxu0 0
      %1078 = vmatpush1.bf16.msra.mxu0 0
      %1079 = vmatprep.subr.bf16.mxu0 0
      %1080 = vmatpush1.bf16.msra.mxu0 0
      %1081 = vmatprep.subr.bf16.mxu0 0
      %1082 = vmatpush1.bf16.msra.mxu0 0
      %1083 = vmatprep.subr.bf16.mxu0 0
      %1084 = vmatpush1.bf16.msra.mxu0 0
      %1085 = vmatprep.mubr.bf16.mxu0 0
      %1086 = vmatmul.mubr.bf16.gmra.mrb[0].mxu0 %v1042
      %v1087 = vpop.f32.mrb[0].mxu0
      %v1088 = vadd.f32 %v381, %v1087
      %v1089 = vpop.f32.mrb[0].mxu0
      %v1090 = vadd.f32 %v385, %v1089
      %v1091 = vpop.f32.mrb[0].mxu0
      %v1092 = vadd.f32 %v381, %v1091
      %v1093 = vpop.f32.mrb[0].mxu0
      %v1094 = vadd.f32 %v385, %v1093
      %1095 = vmatprep.mubr.bf16.mxu0 0
      %1096 = vmatmul.mubr.bf16.gmra.mrb[0].mxu0 %v1045
      %v1097 = vpop.f32.mrb[0].mxu0
      %v1098 = vadd.f32 %v381, %v1097
      %v1099 = vpop.f32.mrb[0].mxu0
      %v1100 = vadd.f32 %v385, %v1099
      %v1101 = vpop.f32.mrb[0].mxu0
      %v1102 = vadd.f32 %v381, %v1101
      %v1103 = vpop.f32.mrb[0].mxu0
      %v1104 = vadd.f32 %v385, %v1103
      %1105 = vmatprep.mubr.bf16.mxu0 0
      %1106 = vmatmul.mubr.bf16.gmra.mrb[0].mxu0 %v1048
      %v1107 = vpop.f32.mrb[0].mxu0
      %v1108 = vadd.f32 %v381, %v1107
      %v1109 = vpop.f32.mrb[0].mxu0
      %v1110 = vadd.f32 %v385, %v1109
      %v1111 = vpop.f32.mrb[0].mxu0
      %v1112 = vadd.f32 %v381, %v1111
      %v1113 = vpop.f32.mrb[0].mxu0
      %v1114 = vadd.f32 %v385, %v1113
      %1115 = vmatprep.mubr.bf16.mxu0 0
      %1116 = vmatmul.mubr.bf16.gmra.mrb[0].mxu0 %v1051
      %v1117 = vpop.f32.mrb[0].mxu0
      %v1118 = vadd.f32 %v381, %v1117
      %v1119 = vpop.f32.mrb[0].mxu0
      %v1120 = vadd.f32 %v385, %v1119
      %v1121 = vpop.f32.mrb[0].mxu0
      %v1122 = vadd.f32 %v381, %v1121
      %v1123 = vpop.f32.mrb[0].mxu0
      %v1124 = vadd.f32 %v385, %v1123
      %1125 = vdwg.mxu0
      %v1126 = vmax.f32 %v1088, 0.0
      %v1127 = vmax.f32 %v1090, 0.0
      %v1128 = vmax.f32 %v1092, 0.0
      %v1129 = vmax.f32 %v1094, 0.0
      %v1130 = vmax.f32 %v1098, 0.0
      %v1131 = vmax.f32 %v1100, 0.0
      %v1132 = vmax.f32 %v1102, 0.0
      %v1133 = vmax.f32 %v1104, 0.0
      %v1134 = vmax.f32 %v1108, 0.0
      %v1135 = vmax.f32 %v1110, 0.0
      %v1136 = vmax.f32 %v1112, 0.0
      %v1137 = vmax.f32 %v1114, 0.0
      %v1138 = vmax.f32 %v1118, 0.0
      %v1139 = vmax.f32 %v1120, 0.0
      %v1140 = vmax.f32 %v1122, 0.0
      %v1141 = vmax.f32 %v1124, 0.0
      %1142 = vst [vmem:[%s228 + $0x30] sm:$0xff] %v1126
      %1143 = vst [vmem:[%s228 + $0x38] sm:$0xff] %v1127
      %1144 = vst [vmem:[%s228 + $0x70] sm:$0xff] %v1128
      %1145 = vst [vmem:[%s228 + $0x78] sm:$0xff] %v1129
      %1146 = vst [vmem:[%s228 + $0xb0] sm:$0xff] %v1130
      %1147 = vst [vmem:[%s228 + $0xb8] sm:$0xff] %v1131
      %1148 = vst [vmem:[%s228 + $0xf0] sm:$0xff] %v1132
      %1149 = vst [vmem:[%s228 + $0xf8] sm:$0xff] %v1133
      %1150 = vst [vmem:[%s228 + $0x130] sm:$0xff] %v1134
      %1151 = vst [vmem:[%s228 + $0x138] sm:$0xff] %v1135
      %1152 = vst [vmem:[%s228 + $0x170] sm:$0xff] %v1136
      %1153 = vst [vmem:[%s228 + $0x178] sm:$0xff] %v1137
      %1154 = vst [vmem:[%s228 + $0x1b0] sm:$0xff] %v1138
      %1155 = vst [vmem:[%s228 + $0x1b8] sm:$0xff] %v1139
      %1156 = vst [vmem:[%s228 + $0x1f0] sm:$0xff] %v1140
      %1157 = vst [vmem:[%s228 + $0x1f8] sm:$0xff] %v1141
      %s1158 = smul.u32 8, %s16
      %p1159 = scmp.lt.s32.totalorder %s1158, 15
      %s1160 = scalar_select %p1159, %s1158, 15
      %s1161 = smul.addr %s1160, 8
      %s1162 = smul.addr %s1161, 8
      %s1163 = scalar_lea.vmem %s5, %s1162
      // Predicated region
      $region41: #{bimla_head_forward.1} parent=39 // pred_check
        %p1164 = pneg %p144
      $region42: #{bimla_head_forward.1} parent=39 // pred_check_branch
        %1166 = sbr.rel (%p1164) target = $region44
      $region43: #{bimla_head_forward.1} parent=39 // pred_region
        %s1167 = smul.u32 8, %s16
      $region44: #{bimla_head_forward.1} parent=39 // pred_fallthru
        _
    $region40: #{bimla_head_forward.1} parent=5 // pred_fallthru
      _
    %p1168 = scmp.le.s32.totalorder 2, %s11
    // Predicated region
    $region45: #{bimla_head_forward.1} parent=5 // pred_check
      %p1169 = pneg %p1168
    $region46: #{bimla_head_forward.1} parent=5 // pred_check_branch
      %1171 = sbr.rel (%p1169) target = $region48
    $region47: #{bimla_head_forward.1} parent=5 // pred_region
      %s1172 = ssub.s32 %s11, 2
      // Predicated region
      $region49: #{bimla_head_forward.1} parent=47 // pred_check
        %p1173 = pneg %p150
      $region50: #{bimla_head_forward.1} parent=47 // pred_check_branch
        %1175 = sbr.rel (%p1173) target = $region52
      $region51: #{bimla_head_forward.1} parent=47 // pred_region
        %s1176 = smul.u32 8, %s17
        %p1177 = scmp.lt.s32.totalorder %s1176, 15
        %s1178 = scalar_select %p1177, %s1176, 15
        %s1179 = smul.addr %s1178, 8
        %s1180 = smul.addr %s1179, 8
        %s1181 = scalar_lea.vmem %s5, %s1180
      $region52: #{bimla_head_forward.1} parent=47 // pred_fallthru
        _
    $region48: #{bimla_head_forward.1} parent=5 // pred_fallthru
      _
  $region6: #{bimla_head_forward.1} parent=0 // loop_footer
    %s15 = sadd.s32 1, %s11
  $region7: #{bimla_head_forward.1} parent=0 // loop_footer_branch
    %10 = sbr.rel target = $region3
  $region8: #{bimla_head_forward.1} parent=0 // loop_exit
    _

</llo_original>
